<compile_context>
chip_gen: v5e
topology: v5e:2x2
jax: 0.10.0
libtpu: 0.0.40
codegen_flags: <defaults>
</compile_context>

<pallas_src>
import itertools

import numpy as np
import jax
import jax.numpy as jnp
from jax.experimental import pallas as pl
from jax.experimental.pallas import tpu as pltpu

MASK_FILL_VALUE = -10.0


def _adaptive_windows(in_size: int, out_size: int):
    """PyTorch adaptive pooling windows: [floor(i*N/os), ceil((i+1)*N/os))."""
    wins = []
    for i in range(out_size):
        start = (i * in_size) // out_size
        end = -(-((i + 1) * in_size) // out_size)  # ceil
        wins.append((start, end))
    return wins


def _round_up(v: int, m: int) -> int:
    return -(-v // m) * m


def _hw_membership(h_wins, w_wins, H, W):
    """(os_h*os_w, H*W) int8 table: row j*os_w+k is 1 inside window (j,k)."""
    os_w = len(w_wins)
    memb = np.zeros((len(h_wins) * os_w, H, W), dtype=np.int8)
    for j, (hs, he) in enumerate(h_wins):
        for k, (ws, we) in enumerate(w_wins):
            memb[j * os_w + k, hs:he, ws:we] = 1
    return memb.reshape(memb.shape[0], H * W)


def _make_kernel(d_wins, os_hw):
    def kernel(x_ref, m_ref, memb_ref, o_ref):
        dtype = x_ref.dtype
        fill = jnp.asarray(MASK_FILL_VALUE, dtype=dtype)
        neg = jnp.asarray(jnp.finfo(dtype).min, dtype=dtype)
        memb = memb_ref[...] != 0                       # (os_hw, HW) bool, tiny

        for i, (ds, de) in enumerate(d_wins):
            xs = x_ref[:, ds:de, :]                     # (tbc, dw, HW)
            ms = m_ref[:, ds:de, :]
            valid = ms if ms.dtype == jnp.bool_ else (ms != 0)
            # Mask fill folded into the depth-window reduce (no full-tile temp).
            slab = jnp.max(jnp.where(valid, xs, fill), axis=1)        # (tbc, HW)
            # All os_h*os_w window maxes in one batched masked lane reduce.
            vals = jnp.where(memb[None, :, :], slab[:, None, :], neg)  # (tbc, os_hw, HW)
            red = jnp.max(vals, axis=-1)                               # (tbc, os_hw)
            # Static-offset row write into the flat (tbc, os**3) output slab.
            o_ref[:, i * os_hw:(i + 1) * os_hw] = red.astype(o_ref.dtype)

    return kernel


def masked_adaptive_max_pool3d(x, mask, output_size: int, *,
                               vmem_budget_bytes: int = 40 << 20,
                               vmem_limit_bytes: int = 48 << 20):
    """x: (B,C,D,H,W) float, mask: (B,C,D,H,W) bool -> (B,C,os,os,os)."""
    B, C, D, H, W = x.shape
    os_ = int(output_size)
    BC, HW = B * C, H * W
    os_hw = os_ * os_
    os3 = os_ ** 3
    itm = np.dtype(x.dtype).itemsize

    # Free reshapes: lane-dense last dim, bool mask passed as-is (1 B/elem).
    x2 = x.reshape(BC, D, HW)
    m2 = mask.reshape(BC, D, HW)

    d_wins = _adaptive_windows(D, os_)
    h_wins = _adaptive_windows(H, os_)
    w_wins = _adaptive_windows(W, os_)
    memb = jnp.asarray(_hw_membership(h_wins, w_wins, H, W))  # (os_hw, HW) int8

    # ---- block sizing by PADDED VMEM bytes -------------------------------
    hw_pad = _round_up(HW, 128)
    x_slice = _round_up(D, 8) * hw_pad * itm            # f32-tiled x block / bc row
    m_slice = _round_up(D, 32) * hw_pad * 1             # int8/bool-tiled mask / bc row
    dwin_pad = _round_up(max(de - ds for ds, de in d_wins), 8)
    tmp_slice = (dwin_pad * hw_pad * itm                 # where() intermediate
                 + hw_pad * itm                          # slab
                 + _round_up(os_hw, 8) * hw_pad * itm    # batched masked reduce operand
                 + _round_up(os_hw, 128) * itm)          # reduced row
    out_slice = 2 * _round_up(os3, 128) * itm            # double-buffered out block
    per_bc = 2 * x_slice + 2 * m_slice + 2 * tmp_slice + out_slice  # 2x tmp = headroom
    fixed = 2 * _round_up(os_hw, 32) * hw_pad            # membership table buffers
    budget = max(per_bc, vmem_budget_bytes - fixed)
    cap = max(1, budget // per_bc)

    # Out block sublane dim must be a multiple of 8 or equal BC; prefer >= 2
    # grid steps (v7x has 2 TensorCores); cdiv grid handles awkward/prime BC.
    if BC <= 8:
        tbc = BC
    else:
        want = min(cap, -(-BC // 2))
        tbc = max(8, 8 * (want // 8))
    grid = (pl.cdiv(BC, tbc),)

    cost = pl.CostEstimate(
        flops=int(3 * BC * D * HW + 2 * BC * os_hw * HW),
        transcendentals=0,
        bytes_accessed=int(BC * D * HW * (itm + 1) + BC * os3 * itm + os_hw * HW),
    )

    kernel = _make_kernel(d_wins, os_hw)

    def _call(m_arr):
        return pl.pallas_call(
            kernel,
            out_shape=jax.ShapeDtypeStruct((BC, os3), x.dtype),
            grid=grid,
            in_specs=[
                pl.BlockSpec((tbc, D, HW), lambda i: (i, 0, 0)),
                pl.BlockSpec((tbc, D, HW), lambda i: (i, 0, 0)),
                pl.BlockSpec((os_hw, HW), lambda i: (0, 0)),   # constant: fetched once
            ],
            out_specs=pl.BlockSpec((tbc, os3), lambda i: (i, 0)),
            compiler_params=pltpu.CompilerParams(
                dimension_semantics=("parallel",),
                vmem_limit_bytes=vmem_limit_bytes,
            ),
            cost_estimate=cost,
        )(x2, m_arr, memb)

    try:
        out2d = _call(m2)                     # bool mask ref, no conversion pass
    except Exception:
        # TODO(synk): drop this fallback once bool refs are guaranteed on all jax versions.
        out2d = _call(m2.astype(jnp.int8))

    return out2d.reshape(B, C, os_, os_, os_)


def _reference(x, mask, output_size: int):
    """Pure-JAX reference with identical semantics."""
    B, C, D, H, W = x.shape
    os_ = int(output_size)
    xm = jnp.where(mask, x, jnp.asarray(MASK_FILL_VALUE, x.dtype))
    d_wins = _adaptive_windows(D, os_)
    h_wins = _adaptive_windows(H, os_)
    w_wins = _adaptive_windows(W, os_)
    out = jnp.zeros((B, C, os_, os_, os_), x.dtype)
    for i, j, k in itertools.product(range(os_), range(os_), range(os_)):
        ds, de = d_wins[i]
        hs, he = h_wins[j]
        ws, we = w_wins[k]
        out = out.at[:, :, i, j, k].set(
            jnp.max(xm[:, :, ds:de, hs:he, ws:we], axis=(2, 3, 4)))
    return out


if __name__ == "__main__":
    key = jax.random.PRNGKey(0)

    configs = [
        # (B, C, D, H, W, output_size)
        (2, 4, 5, 7, 9, 2),     # non-divisible spatial dims, single grid step
        (1, 3, 6, 10, 12, 3),   # odd BC, output_size=3
        (4, 5, 4, 6, 8, 2),     # BC=20 -> tbc=8, grid=3 with a partial last block
    ]

    for idx, (B, C, D, H, W, os_) in enumerate(configs, 1):
        kx, km = jax.random.split(jax.random.fold_in(key, idx))
        x = jax.random.normal(kx, (B, C, D, H, W), dtype=jnp.float32)
        mask = jax.random.bernoulli(km, 0.7, (B, C, D, H, W))

        out = jax.block_until_ready(masked_adaptive_max_pool3d(x, mask, os_))
        ref = _reference(x, mask, os_)
        assert out.shape == (B, C, os_, os_, os_), f"bad shape (cfg {idx})"
        assert jnp.allclose(out, ref, atol=1e-6), f"mismatch vs pure-JAX reference (cfg {idx})"

    print("KERNEL_OK")
</pallas_src>

<mosaic_0001>
module attributes {stable_mosaic.version = 11 : i64} {
  func.func @kernel(%arg0: i32, %arg1: memref<8x5x63xf32, #tpu.memory_space<vmem>>, %arg2: memref<8x5x63xi32, #tpu.memory_space<vmem>>, %arg3: memref<4x63xi8, #tpu.memory_space<vmem>>, %arg4: memref<8x8xf32, #tpu.memory_space<vmem>>) attributes {dimension_semantics = [#tpu.dimension_semantics<parallel>], iteration_bounds = array<i64: 1>, scalar_prefetch = 0 : i64, scratch_operands = 0 : i64, tpu.core_type = #tpu.core_type<tc>, window_params = [{transform_indices = @transform_0, window_bounds = array<i64: 8, 5, 63>}, {transform_indices = @transform_1, window_bounds = array<i64: 8, 5, 63>}, {pipeline_mode = #tpu.pipeline_mode<synchronous>, transform_indices = @transform_2, window_bounds = array<i64: 4, 63>}, {transform_indices = @transform_3, window_bounds = array<i64: 8, 8>}]} {
    %c0 = arith.constant 0 : index
    %c0_0 = arith.constant 0 : index
    %0 = vector.load %arg3[%c0, %c0_0] : memref<4x63xi8, #tpu.memory_space<vmem>>, vector<4x63xi8>
    %c0_i8 = arith.constant 0 : i8
    %1 = vector.broadcast %c0_i8 : i8 to vector<4x63xi8>
    %2 = arith.cmpi ne, %0, %1 : vector<4x63xi8>
    %c0_1 = arith.constant 0 : index
    %c0_2 = arith.constant 0 : index
    %c0_3 = arith.constant 0 : index
    %3 = vector.load %arg1[%c0_1, %c0_2, %c0_3] : memref<8x5x63xf32, #tpu.memory_space<vmem>>, vector<8x3x63xf32>
    %c0_4 = arith.constant 0 : index
    %c0_5 = arith.constant 0 : index
    %c0_6 = arith.constant 0 : index
    %4 = vector.load %arg2[%c0_4, %c0_5, %c0_6] : memref<8x5x63xi32, #tpu.memory_space<vmem>>, vector<8x3x63xi32>
    %cst = arith.constant dense<0> : vector<8x3x63xi32>
    %5 = arith.cmpi ne, %4, %cst : vector<8x3x63xi32>
    %cst_7 = arith.constant -1.000000e+01 : f32
    %6 = vector.broadcast %cst_7 : f32 to vector<8x3x63xf32>
    %7 = arith.select %5, %3, %6 : vector<8x3x63xi1>, vector<8x3x63xf32>
    %cst_8 = arith.constant dense<0xFF800000> : vector<8x63xf32>
    %8 = vector.multi_reduction <maximumf>, %7, %cst_8 [1] : vector<8x3x63xf32> to vector<8x63xf32>
    %9 = vector.shape_cast %2 : vector<4x63xi1> to vector<1x4x63xi1>
    %10 = vector.shape_cast %8 : vector<8x63xf32> to vector<8x1x63xf32>
    %cst_9 = arith.constant -3.40282347E+38 : f32
    %11 = vector.shape_cast %9 : vector<1x4x63xi1> to vector<1x4x63xi1>
    %12 = vector.broadcast %11 : vector<1x4x63xi1> to vector<8x4x63xi1>
    %13 = vector.shape_cast %10 : vector<8x1x63xf32> to vector<8x1x63xf32>
    %14 = vector.broadcast %13 : vector<8x1x63xf32> to vector<8x4x63xf32>
    %15 = vector.broadcast %cst_9 : f32 to vector<8x4x63xf32>
    %16 = arith.select %12, %14, %15 : vector<8x4x63xi1>, vector<8x4x63xf32>
    %cst_10 = arith.constant dense<0xFF800000> : vector<8x4xf32>
    %17 = vector.multi_reduction <maximumf>, %16, %cst_10 [2] : vector<8x4x63xf32> to vector<8x4xf32>
    %c0_11 = arith.constant 0 : index
    %c0_12 = arith.constant 0 : index
    %18 = vector.load %arg4[%c0_11, %c0_12] : memref<8x8xf32, #tpu.memory_space<vmem>>, vector<8x4xf32>
    tpu.vector_store %arg4[%c0_11, %c0_12], %17 {strides = array<i32>} : memref<8x8xf32, #tpu.memory_space<vmem>>, vector<8x4xf32>,
    %c0_13 = arith.constant 0 : index
    %c2 = arith.constant 2 : index
    %c0_14 = arith.constant 0 : index
    %19 = vector.load %arg1[%c0_13, %c2, %c0_14] : memref<8x5x63xf32, #tpu.memory_space<vmem>>, vector<8x3x63xf32>
    %c0_15 = arith.constant 0 : index
    %c2_16 = arith.constant 2 : index
    %c0_17 = arith.constant 0 : index
    %20 = vector.load %arg2[%c0_15, %c2_16, %c0_17] : memref<8x5x63xi32, #tpu.memory_space<vmem>>, vector<8x3x63xi32>
    %cst_18 = arith.constant dense<0> : vector<8x3x63xi32>
    %21 = arith.cmpi ne, %20, %cst_18 : vector<8x3x63xi32>
    %cst_19 = arith.constant -1.000000e+01 : f32
    %22 = vector.broadcast %cst_19 : f32 to vector<8x3x63xf32>
    %23 = arith.select %21, %19, %22 : vector<8x3x63xi1>, vector<8x3x63xf32>
    %cst_20 = arith.constant dense<0xFF800000> : vector<8x63xf32>
    %24 = vector.multi_reduction <maximumf>, %23, %cst_20 [1] : vector<8x3x63xf32> to vector<8x63xf32>
    %25 = vector.shape_cast %2 : vector<4x63xi1> to vector<1x4x63xi1>
    %26 = vector.shape_cast %24 : vector<8x63xf32> to vector<8x1x63xf32>
    %cst_21 = arith.constant -3.40282347E+38 : f32
    %27 = vector.shape_cast %25 : vector<1x4x63xi1> to vector<1x4x63xi1>
    %28 = vector.broadcast %27 : vector<1x4x63xi1> to vector<8x4x63xi1>
    %29 = vector.shape_cast %26 : vector<8x1x63xf32> to vector<8x1x63xf32>
    %30 = vector.broadcast %29 : vector<8x1x63xf32> to vector<8x4x63xf32>
    %31 = vector.broadcast %cst_21 : f32 to vector<8x4x63xf32>
    %32 = arith.select %28, %30, %31 : vector<8x4x63xi1>, vector<8x4x63xf32>
    %cst_22 = arith.constant dense<0xFF800000> : vector<8x4xf32>
    %33 = vector.multi_reduction <maximumf>, %32, %cst_22 [2] : vector<8x4x63xf32> to vector<8x4xf32>
    %c0_23 = arith.constant 0 : index
    %c4 = arith.constant 4 : index
    %34 = vector.load %arg4[%c0_23, %c4] : memref<8x8xf32, #tpu.memory_space<vmem>>, vector<8x4xf32>
    tpu.vector_store %arg4[%c0_23, %c4], %33 {strides = array<i32>} : memref<8x8xf32, #tpu.memory_space<vmem>>, vector<8x4xf32>,
    return
  }
  func.func @transform_0(%arg0: i32) -> (i32, i32, i32) {
    %c0_i32 = arith.constant 0 : i32
    %c0_i32_0 = arith.constant 0 : i32
    %c0_i32_1 = arith.constant 0 : i32
    return %arg0, %c0_i32, %c0_i32_0 : i32, i32, i32
  }
  func.func @transform_1(%arg0: i32) -> (i32, i32, i32) {
    %c0_i32 = arith.constant 0 : i32
    %c0_i32_0 = arith.constant 0 : i32
    %c0_i32_1 = arith.constant 0 : i32
    return %arg0, %c0_i32, %c0_i32_0 : i32, i32, i32
  }
  func.func @transform_2(%arg0: i32) -> (i32, i32) {
    %c0_i32 = arith.constant 0 : i32
    %c0_i32_0 = arith.constant 0 : i32
    %c0_i32_1 = arith.constant 0 : i32
    return %c0_i32, %c0_i32_0 : i32, i32
  }
  func.func @transform_3(%arg0: i32) -> (i32, i32) {
    %c0_i32 = arith.constant 0 : i32
    %c0_i32_0 = arith.constant 0 : i32
    return %arg0, %c0_i32 : i32, i32
  }
}

module attributes {stable_mosaic.version = 11 : i64} {
  func.func @kernel(%arg0: i32, %arg1: memref<8x5x63xf32, #tpu.memory_space<vmem>>, %arg2: memref<8x5x63xi8, #tpu.memory_space<vmem>>, %arg3: memref<4x63xi8, #tpu.memory_space<vmem>>, %arg4: memref<8x8xf32, #tpu.memory_space<vmem>>) attributes {dimension_semantics = [#tpu.dimension_semantics<parallel>], iteration_bounds = array<i64: 1>, scalar_prefetch = 0 : i64, scratch_operands = 0 : i64, tpu.core_type = #tpu.core_type<tc>, window_params = [{transform_indices = @transform_0, window_bounds = array<i64: 8, 5, 63>}, {transform_indices = @transform_1, window_bounds = array<i64: 8, 5, 63>}, {pipeline_mode = #tpu.pipeline_mode<synchronous>, transform_indices = @transform_2, window_bounds = array<i64: 4, 63>}, {transform_indices = @transform_3, window_bounds = array<i64: 8, 8>}]} {
    %c0 = arith.constant 0 : index
    %c0_0 = arith.constant 0 : index
    %0 = vector.load %arg3[%c0, %c0_0] : memref<4x63xi8, #tpu.memory_space<vmem>>, vector<4x63xi8>
    %c0_i8 = arith.constant 0 : i8
    %1 = vector.broadcast %c0_i8 : i8 to vector<4x63xi8>
    %2 = arith.cmpi ne, %0, %1 : vector<4x63xi8>
    %c0_1 = arith.constant 0 : index
    %c0_2 = arith.constant 0 : index
    %c0_3 = arith.constant 0 : index
    %3 = vector.load %arg1[%c0_1, %c0_2, %c0_3] : memref<8x5x63xf32, #tpu.memory_space<vmem>>, vector<8x3x63xf32>
    %c0_4 = arith.constant 0 : index
    %c0_5 = arith.constant 0 : index
    %c0_6 = arith.constant 0 : index
    %4 = vector.load %arg2[%c0_4, %c0_5, %c0_6] : memref<8x5x63xi8, #tpu.memory_space<vmem>>, vector<8x3x63xi8>
    %c0_i8_7 = arith.constant 0 : i8
    %5 = vector.broadcast %c0_i8_7 : i8 to vector<8x3x63xi8>
    %6 = arith.cmpi ne, %4, %5 : vector<8x3x63xi8>
    %cst = arith.constant -1.000000e+01 : f32
    %7 = vector.broadcast %cst : f32 to vector<8x3x63xf32>
    %8 = arith.select %6, %3, %7 : vector<8x3x63xi1>, vector<8x3x63xf32>
    %cst_8 = arith.constant dense<0xFF800000> : vector<8x63xf32>
    %9 = vector.multi_reduction <maximumf>, %8, %cst_8 [1] : vector<8x3x63xf32> to vector<8x63xf32>
    %10 = vector.shape_cast %2 : vector<4x63xi1> to vector<1x4x63xi1>
    %11 = vector.shape_cast %9 : vector<8x63xf32> to vector<8x1x63xf32>
    %cst_9 = arith.constant -3.40282347E+38 : f32
    %12 = vector.shape_cast %10 : vector<1x4x63xi1> to vector<1x4x63xi1>
    %13 = vector.broadcast %12 : vector<1x4x63xi1> to vector<8x4x63xi1>
    %14 = vector.shape_cast %11 : vector<8x1x63xf32> to vector<8x1x63xf32>
    %15 = vector.broadcast %14 : vector<8x1x63xf32> to vector<8x4x63xf32>
    %16 = vector.broadcast %cst_9 : f32 to vector<8x4x63xf32>
    %17 = arith.select %13, %15, %16 : vector<8x4x63xi1>, vector<8x4x63xf32>
    %cst_10 = arith.constant dense<0xFF800000> : vector<8x4xf32>
    %18 = vector.multi_reduction <maximumf>, %17, %cst_10 [2] : vector<8x4x63xf32> to vector<8x4xf32>
    %c0_11 = arith.constant 0 : index
    %c0_12 = arith.constant 0 : index
    %19 = vector.load %arg4[%c0_11, %c0_12] : memref<8x8xf32, #tpu.memory_space<vmem>>, vector<8x4xf32>
    tpu.vector_store %arg4[%c0_11, %c0_12], %18 {strides = array<i32>} : memref<8x8xf32, #tpu.memory_space<vmem>>, vector<8x4xf32>,
    %c0_13 = arith.constant 0 : index
    %c2 = arith.constant 2 : index
    %c0_14 = arith.constant 0 : index
    %20 = vector.load %arg1[%c0_13, %c2, %c0_14] : memref<8x5x63xf32, #tpu.memory_space<vmem>>, vector<8x3x63xf32>
    %c0_15 = arith.constant 0 : index
    %c2_16 = arith.constant 2 : index
    %c0_17 = arith.constant 0 : index
    %21 = vector.load %arg2[%c0_15, %c2_16, %c0_17] : memref<8x5x63xi8, #tpu.memory_space<vmem>>, vector<8x3x63xi8>
    %c0_i8_18 = arith.constant 0 : i8
    %22 = vector.broadcast %c0_i8_18 : i8 to vector<8x3x63xi8>
    %23 = arith.cmpi ne, %21, %22 : vector<8x3x63xi8>
    %cst_19 = arith.constant -1.000000e+01 : f32
    %24 = vector.broadcast %cst_19 : f32 to vector<8x3x63xf32>
    %25 = arith.select %23, %20, %24 : vector<8x3x63xi1>, vector<8x3x63xf32>
    %cst_20 = arith.constant dense<0xFF800000> : vector<8x63xf32>
    %26 = vector.multi_reduction <maximumf>, %25, %cst_20 [1] : vector<8x3x63xf32> to vector<8x63xf32>
    %27 = vector.shape_cast %2 : vector<4x63xi1> to vector<1x4x63xi1>
    %28 = vector.shape_cast %26 : vector<8x63xf32> to vector<8x1x63xf32>
    %cst_21 = arith.constant -3.40282347E+38 : f32
    %29 = vector.shape_cast %27 : vector<1x4x63xi1> to vector<1x4x63xi1>
    %30 = vector.broadcast %29 : vector<1x4x63xi1> to vector<8x4x63xi1>
    %31 = vector.shape_cast %28 : vector<8x1x63xf32> to vector<8x1x63xf32>
    %32 = vector.broadcast %31 : vector<8x1x63xf32> to vector<8x4x63xf32>
    %33 = vector.broadcast %cst_21 : f32 to vector<8x4x63xf32>
    %34 = arith.select %30, %32, %33 : vector<8x4x63xi1>, vector<8x4x63xf32>
    %cst_22 = arith.constant dense<0xFF800000> : vector<8x4xf32>
    %35 = vector.multi_reduction <maximumf>, %34, %cst_22 [2] : vector<8x4x63xf32> to vector<8x4xf32>
    %c0_23 = arith.constant 0 : index
    %c4 = arith.constant 4 : index
    %36 = vector.load %arg4[%c0_23, %c4] : memref<8x8xf32, #tpu.memory_space<vmem>>, vector<8x4xf32>
    tpu.vector_store %arg4[%c0_23, %c4], %35 {strides = array<i32>} : memref<8x8xf32, #tpu.memory_space<vmem>>, vector<8x4xf32>,
    return
  }
  func.func @transform_0(%arg0: i32) -> (i32, i32, i32) {
    %c0_i32 = arith.constant 0 : i32
    %c0_i32_0 = arith.constant 0 : i32
    %c0_i32_1 = arith.constant 0 : i32
    return %arg0, %c0_i32, %c0_i32_0 : i32, i32, i32
  }
  func.func @transform_1(%arg0: i32) -> (i32, i32, i32) {
    %c0_i32 = arith.constant 0 : i32
    %c0_i32_0 = arith.constant 0 : i32
    %c0_i32_1 = arith.constant 0 : i32
    return %arg0, %c0_i32, %c0_i32_0 : i32, i32, i32
  }
  func.func @transform_2(%arg0: i32) -> (i32, i32) {
    %c0_i32 = arith.constant 0 : i32
    %c0_i32_0 = arith.constant 0 : i32
    %c0_i32_1 = arith.constant 0 : i32
    return %c0_i32, %c0_i32_0 : i32, i32
  }
  func.func @transform_3(%arg0: i32) -> (i32, i32) {
    %c0_i32 = arith.constant 0 : i32
    %c0_i32_0 = arith.constant 0 : i32
    return %arg0, %c0_i32 : i32, i32
  }
}

</mosaic_0001>

<llo_original>
// kernel: tpu_custom_call.1
$region0: #{tpu_custom_call.1}
  #allocation0 [shape = 'u32[]', space=smem, size = 0x4, offset = 0x4, fixed_abs, tag = 'smem constant byte address 0x4 - core index']
  #allocation1 [shape = 'u32[72,128]{1,0:T(1,128)}', space=vmem, size = 0x9000, scoped, tag = 'internal scratch']
  %s0 = inlined_call_operand.vmem [shape: f32[8,5,63], index: 0, kind: input, shape index: {}]
  %s1 = inlined_call_operand.vmem [shape: s32[8,5,63], index: 1, kind: input, shape index: {}]
  %s2 = inlined_call_operand.vmem [shape: s8[4,63], index: 2, kind: input, shape index: {}]
  %s3 = inlined_call_operand.hbm [shape: f32[8,8], index: 3, kind: output, shape index: {}]
  %s4 = sld [smem:[#allocation0]]
  $region22: #{tpu_custom_call.1} parent=0
    _
  %s6 = ssub.s32 1, %s4
  %s7 = scalar_select 0, %s6, %s4
  $region1: #{tpu_custom_call.1} parent=0
    #allocation2 [shape = 'u8[4096]{0}', space=vmem, size = 0x1000, scoped, tag = 'output window, operand 0, single buffered']
    #allocation3 [shape = 's32[1]{0}', space=sflag, size = 0x4, scoped, tag = 'scoped memory for tpu_custom_call.1']
    %8 = vsyncpa [#allocation3], 0
    // Predicated region
    $region2: #{tpu_custom_call.1} parent=1 // pred_check
      _
    $region3: #{tpu_custom_call.1} parent=1 // pred_check_branch
      %10 = sbr.rel (0) target = $region5
    $region4: #{tpu_custom_call.1} parent=1 // pred_region
      _
    $region5: #{tpu_custom_call.1} parent=1 // pred_fallthru
      _
    // Predicated region
    $region6: #{tpu_custom_call.1} parent=1 // pred_check
      _
    $region7: #{tpu_custom_call.1} parent=1 // pred_check_branch
      %12 = sbr.rel (0) target = $region9
    $region8: #{tpu_custom_call.1} parent=1 // pred_region
      _
    $region9: #{tpu_custom_call.1} parent=1 // pred_fallthru
      _
    // Predicated region
    $region10: #{tpu_custom_call.1} parent=1 // pred_check
      _
    $region11: #{tpu_custom_call.1} parent=1 // pred_check_branch
      %14 = sbr.rel (0) target = $region13
    $region12: #{tpu_custom_call.1} parent=1 // pred_region
      _
    $region13: #{tpu_custom_call.1} parent=1 // pred_fallthru
      _
    %v17 = vld [vmem:[%s2] sm:$0x1]
    %vm18 = vnez %v17
    %v19 = vld [vmem:[%s0] sm:$0x7]
    %v20 = vld [vmem:[%s0 + $0x8] sm:$0x7]
    %v21 = vld [vmem:[%s0 + $0x10] sm:$0x7]
    %v22 = vld [vmem:[%s0 + $0x18] sm:$0x7]
    %v23 = vld [vmem:[%s0 + $0x20] sm:$0x7]
    %v24 = vld [vmem:[%s0 + $0x28] sm:$0x7]
    %v25 = vld [vmem:[%s0 + $0x30] sm:$0x7]
    %v26 = vld [vmem:[%s0 + $0x38] sm:$0x7]
    %v27 = vld [vmem:[%s1] sm:$0x7]
    %v28 = vld [vmem:[%s1 + $0x8] sm:$0x7]
    %v29 = vld [vmem:[%s1 + $0x10] sm:$0x7]
    %v30 = vld [vmem:[%s1 + $0x18] sm:$0x7]
    %v31 = vld [vmem:[%s1 + $0x20] sm:$0x7]
    %v32 = vld [vmem:[%s1 + $0x28] sm:$0x7]
    %v33 = vld [vmem:[%s1 + $0x30] sm:$0x7]
    %v34 = vld [vmem:[%s1 + $0x38] sm:$0x7]
    %vm35 = vcmp.ne.s32.totalorder %v27, 0
    %vm36 = vcmp.ne.s32.totalorder %v28, 0
    %vm37 = vcmp.ne.s32.totalorder %v29, 0
    %vm38 = vcmp.ne.s32.totalorder %v30, 0
    %vm39 = vcmp.ne.s32.totalorder %v31, 0
    %vm40 = vcmp.ne.s32.totalorder %v32, 0
    %vm41 = vcmp.ne.s32.totalorder %v33, 0
    %vm42 = vcmp.ne.s32.totalorder %v34, 0
    %v43 = vsel %vm35, %v19, -10.0
    %v44 = vsel %vm36, %v20, -10.0
    %v45 = vsel %vm37, %v21, -10.0
    %v46 = vsel %vm38, %v22, -10.0
    %v47 = vsel %vm39, %v23, -10.0
    %v48 = vsel %vm40, %v24, -10.0
    %v49 = vsel %vm41, %v25, -10.0
    %v50 = vsel %vm42, %v26, -10.0
    %vm51 = vcmask 509952
    %v52 = vsel %vm51, %v43, -inf
    %v53 = vrot.slane %v52, 4
    %v54 = vmax.f32 %v52, %v53
    %v55 = vrot.slane %v54, 2
    %v56 = vmax.f32 %v54, %v55
    %v57 = vrot.slane %v56, 1
    %v58 = vmax.f32 %v56, %v57
    %v59 = vsel %vm51, %v44, -inf
    %v60 = vrot.slane %v59, 4
    %v61 = vmax.f32 %v59, %v60
    %v62 = vrot.slane %v61, 2
    %v63 = vmax.f32 %v61, %v62
    %v64 = vrot.slane %v63, 1
    %v65 = vmax.f32 %v63, %v64
    %v66 = vsel %vm51, %v45, -inf
    %v67 = vrot.slane %v66, 4
    %v68 = vmax.f32 %v66, %v67
    %v69 = vrot.slane %v68, 2
    %v70 = vmax.f32 %v68, %v69
    %v71 = vrot.slane %v70, 1
    %v72 = vmax.f32 %v70, %v71
    %v73 = vsel %vm51, %v46, -inf
    %v74 = vrot.slane %v73, 4
    %v75 = vmax.f32 %v73, %v74
    %v76 = vrot.slane %v75, 2
    %v77 = vmax.f32 %v75, %v76
    %v78 = vrot.slane %v77, 1
    %v79 = vmax.f32 %v77, %v78
    %v80 = vsel %vm51, %v47, -inf
    %v81 = vrot.slane %v80, 4
    %v82 = vmax.f32 %v80, %v81
    %v83 = vrot.slane %v82, 2
    %v84 = vmax.f32 %v82, %v83
    %v85 = vrot.slane %v84, 1
    %v86 = vmax.f32 %v84, %v85
    %v87 = vsel %vm51, %v48, -inf
    %v88 = vrot.slane %v87, 4
    %v89 = vmax.f32 %v87, %v88
    %v90 = vrot.slane %v89, 2
    %v91 = vmax.f32 %v89, %v90
    %v92 = vrot.slane %v91, 1
    %v93 = vmax.f32 %v91, %v92
    %v94 = vsel %vm51, %v49, -inf
    %v95 = vrot.slane %v94, 4
    %v96 = vmax.f32 %v94, %v95
    %v97 = vrot.slane %v96, 2
    %v98 = vmax.f32 %v96, %v97
    %v99 = vrot.slane %v98, 1
    %v100 = vmax.f32 %v98, %v99
    %v101 = vsel %vm51, %v50, -inf
    %v102 = vrot.slane %v101, 4
    %v103 = vmax.f32 %v101, %v102
    %v104 = vrot.slane %v103, 2
    %v105 = vmax.f32 %v103, %v104
    %v106 = vrot.slane %v105, 1
    %v107 = vmax.f32 %v105, %v106
    %v108 = vsel %vm18, 16843009, 0
    %v109 = vunpack.c.0.s8 %v108
    %vm110 = vcmp.ne.s32.totalorder %v109, 0
    %v111 = vsel %vm110, 1, 0
    %vm112 = vcmp.eq.s32.totalorder %v111, 1
    %v113 = vsel %vm112, %v58, -3.4028235e+38
    %v114 = vsel %vm112, %v65, -3.4028235e+38
    %v115 = vsel %vm112, %v72, -3.4028235e+38
    %v116 = vsel %vm112, %v79, -3.4028235e+38
    %v117 = vsel %vm112, %v86, -3.4028235e+38
    %v118 = vsel %vm112, %v93, -3.4028235e+38
    %v119 = vsel %vm112, %v100, -3.4028235e+38
    %v120 = vsel %vm112, %v107, -3.4028235e+38
    %vm121 = vcmask 510976
    %v122 = vsel %vm121, %v113, -inf
    %123 = vmax.xlane.f32.xlu0 %v122
    %v124 = vpop.xlane.xlu0 %123
    %v125 = vsel %vm121, %v114, -inf
    %126 = vmax.xlane.f32.xlu0 %v125
    %v127 = vpop.xlane.xlu0 %126
    %v128 = vsel %vm121, %v115, -inf
    %129 = vmax.xlane.f32.xlu0 %v128
    %v130 = vpop.xlane.xlu0 %129
    %v131 = vsel %vm121, %v116, -inf
    %132 = vmax.xlane.f32.xlu0 %v131
    %v133 = vpop.xlane.xlu0 %132
    %v134 = vsel %vm121, %v117, -inf
    %135 = vmax.xlane.f32.xlu0 %v134
    %v136 = vpop.xlane.xlu0 %135
    %v137 = vsel %vm121, %v118, -inf
    %138 = vmax.xlane.f32.xlu0 %v137
    %v139 = vpop.xlane.xlu0 %138
    %v140 = vsel %vm121, %v119, -inf
    %141 = vmax.xlane.f32.xlu0 %v140
    %v142 = vpop.xlane.xlu0 %141
    %v143 = vsel %vm121, %v120, -inf
    %144 = vmax.xlane.f32.xlu0 %v143
    %v145 = vpop.xlane.xlu0 %144
    %v154 = vlaneseq
    %v155 = vand.u32 %v154, 127
    %v156 = vperm.slane %v124, %v155
    %v157 = vperm.slane %v127, %v155
    %v158 = vperm.slane %v130, %v155
    %v159 = vperm.slane %v133, %v155
    %v160 = vperm.slane %v136, %v155
    %v161 = vperm.slane %v139, %v155
    %v162 = vperm.slane %v142, %v155
    %v163 = vperm.slane %v145, %v155
    %vm164 = vcmask 1041409
    %v165 = vsel %vm164, %v157, %v156
    %vm166 = vcmask 1042434
    %v167 = vsel %vm166, %v158, %v165
    %vm168 = vcmask 1043459
    %v169 = vsel %vm168, %v159, %v167
    %vm170 = vcmask 1044484
    %v171 = vsel %vm170, %v160, %v169
    %vm172 = vcmask 1045509
    %v173 = vsel %vm172, %v161, %v171
    %vm174 = vcmask 1046534
    %v175 = vsel %vm174, %v162, %v173
    %vm176 = vcmask 1047559
    %v177 = vsel %vm176, %v163, %v175
    %vm179 = vcmask 31744
    %180 = vst.msk [vmem:[#allocation2] sm:$0xff] %vm179, %v177
    %v181 = vld [vmem:[%s0 + $0x2] sm:$0x7]
    %v182 = vld [vmem:[%s0 + $0xa] sm:$0x7]
    %v183 = vld [vmem:[%s0 + $0x12] sm:$0x7]
    %v184 = vld [vmem:[%s0 + $0x1a] sm:$0x7]
    %v185 = vld [vmem:[%s0 + $0x22] sm:$0x7]
    %v186 = vld [vmem:[%s0 + $0x2a] sm:$0x7]
    %v187 = vld [vmem:[%s0 + $0x32] sm:$0x7]
    %v188 = vld [vmem:[%s0 + $0x3a] sm:$0x7]
    %v189 = vld [vmem:[%s1 + $0x2] sm:$0x7]
    %v190 = vld [vmem:[%s1 + $0xa] sm:$0x7]
    %v191 = vld [vmem:[%s1 + $0x12] sm:$0x7]
    %v192 = vld [vmem:[%s1 + $0x1a] sm:$0x7]
    %v193 = vld [vmem:[%s1 + $0x22] sm:$0x7]
    %v194 = vld [vmem:[%s1 + $0x2a] sm:$0x7]
    %v195 = vld [vmem:[%s1 + $0x32] sm:$0x7]
    %v196 = vld [vmem:[%s1 + $0x3a] sm:$0x7]
    %vm197 = vcmp.ne.s32.totalorder %v189, 0
    %vm198 = vcmp.ne.s32.totalorder %v190, 0
    %vm199 = vcmp.ne.s32.totalorder %v191, 0
    %vm200 = vcmp.ne.s32.totalorder %v192, 0
    %vm201 = vcmp.ne.s32.totalorder %v193, 0
    %vm202 = vcmp.ne.s32.totalorder %v194, 0
    %vm203 = vcmp.ne.s32.totalorder %v195, 0
    %vm204 = vcmp.ne.s32.totalorder %v196, 0
    %v205 = vsel %vm197, %v181, -10.0
    %v206 = vsel %vm198, %v182, -10.0
    %v207 = vsel %vm199, %v183, -10.0
    %v208 = vsel %vm200, %v184, -10.0
    %v209 = vsel %vm201, %v185, -10.0
    %v210 = vsel %vm202, %v186, -10.0
    %v211 = vsel %vm203, %v187, -10.0
    %v212 = vsel %vm204, %v188, -10.0
    %v213 = vsel %vm51, %v205, -inf
    %v214 = vrot.slane %v213, 4
    %v215 = vmax.f32 %v213, %v214
    %v216 = vrot.slane %v215, 2
    %v217 = vmax.f32 %v215, %v216
    %v218 = vrot.slane %v217, 1
    %v219 = vmax.f32 %v217, %v218
    %v220 = vsel %vm51, %v206, -inf
    %v221 = vrot.slane %v220, 4
    %v222 = vmax.f32 %v220, %v221
    %v223 = vrot.slane %v222, 2
    %v224 = vmax.f32 %v222, %v223
    %v225 = vrot.slane %v224, 1
    %v226 = vmax.f32 %v224, %v225
    %v227 = vsel %vm51, %v207, -inf
    %v228 = vrot.slane %v227, 4
    %v229 = vmax.f32 %v227, %v228
    %v230 = vrot.slane %v229, 2
    %v231 = vmax.f32 %v229, %v230
    %v232 = vrot.slane %v231, 1
    %v233 = vmax.f32 %v231, %v232
    %v234 = vsel %vm51, %v208, -inf
    %v235 = vrot.slane %v234, 4
    %v236 = vmax.f32 %v234, %v235
    %v237 = vrot.slane %v236, 2
    %v238 = vmax.f32 %v236, %v237
    %v239 = vrot.slane %v238, 1
    %v240 = vmax.f32 %v238, %v239
    %v241 = vsel %vm51, %v209, -inf
    %v242 = vrot.slane %v241, 4
    %v243 = vmax.f32 %v241, %v242
    %v244 = vrot.slane %v243, 2
    %v245 = vmax.f32 %v243, %v244
    %v246 = vrot.slane %v245, 1
    %v247 = vmax.f32 %v245, %v246
    %v248 = vsel %vm51, %v210, -inf
    %v249 = vrot.slane %v248, 4
    %v250 = vmax.f32 %v248, %v249
    %v251 = vrot.slane %v250, 2
    %v252 = vmax.f32 %v250, %v251
    %v253 = vrot.slane %v252, 1
    %v254 = vmax.f32 %v252, %v253
    %v255 = vsel %vm51, %v211, -inf
    %v256 = vrot.slane %v255, 4
    %v257 = vmax.f32 %v255, %v256
    %v258 = vrot.slane %v257, 2
    %v259 = vmax.f32 %v257, %v258
    %v260 = vrot.slane %v259, 1
    %v261 = vmax.f32 %v259, %v260
    %v262 = vsel %vm51, %v212, -inf
    %v263 = vrot.slane %v262, 4
    %v264 = vmax.f32 %v262, %v263
    %v265 = vrot.slane %v264, 2
    %v266 = vmax.f32 %v264, %v265
    %v267 = vrot.slane %v266, 1
    %v268 = vmax.f32 %v266, %v267
    %v269 = vsel %vm112, %v219, -3.4028235e+38
    %v270 = vsel %vm112, %v226, -3.4028235e+38
    %v271 = vsel %vm112, %v233, -3.4028235e+38
    %v272 = vsel %vm112, %v240, -3.4028235e+38
    %v273 = vsel %vm112, %v247, -3.4028235e+38
    %v274 = vsel %vm112, %v254, -3.4028235e+38
    %v275 = vsel %vm112, %v261, -3.4028235e+38
    %v276 = vsel %vm112, %v268, -3.4028235e+38
    %v277 = vsel %vm121, %v269, -inf
    %278 = vmax.xlane.f32.xlu0 %v277
    %v279 = vpop.xlane.xlu0 %278
    %v280 = vsel %vm121, %v270, -inf
    %281 = vmax.xlane.f32.xlu0 %v280
    %v282 = vpop.xlane.xlu0 %281
    %v283 = vsel %vm121, %v271, -inf
    %284 = vmax.xlane.f32.xlu0 %v283
    %v285 = vpop.xlane.xlu0 %284
    %v286 = vsel %vm121, %v272, -inf
    %287 = vmax.xlane.f32.xlu0 %v286
    %v288 = vpop.xlane.xlu0 %287
    %v289 = vsel %vm121, %v273, -inf
    %290 = vmax.xlane.f32.xlu0 %v289
    %v291 = vpop.xlane.xlu0 %290
    %v292 = vsel %vm121, %v274, -inf
    %293 = vmax.xlane.f32.xlu0 %v292
    %v294 = vpop.xlane.xlu0 %293
    %v295 = vsel %vm121, %v275, -inf
    %296 = vmax.xlane.f32.xlu0 %v295
    %v297 = vpop.xlane.xlu0 %296
    %v298 = vsel %vm121, %v276, -inf
    %299 = vmax.xlane.f32.xlu0 %v298
    %v300 = vpop.xlane.xlu0 %299
    %v309 = vadd.s32 %v155, 4294967292
    %v310 = vperm.slane %v279, %v309
    %v311 = vperm.slane %v282, %v309
    %v312 = vperm.slane %v285, %v309
    %v313 = vperm.slane %v288, %v309
    %v314 = vperm.slane %v291, %v309
    %v315 = vperm.slane %v294, %v309
    %v316 = vperm.slane %v297, %v309
    %v317 = vperm.slane %v300, %v309
    %v318 = vsel %vm164, %v311, %v310
    %v319 = vsel %vm166, %v312, %v318
    %v320 = vsel %vm168, %v313, %v319
    %v321 = vsel %vm170, %v314, %v320
    %v322 = vsel %vm172, %v315, %v321
    %v323 = vsel %vm174, %v316, %v322
    %v324 = vsel %vm176, %v317, %v323
    %vm326 = vcmask 64544
    %327 = vst.msk [vmem:[#allocation2] sm:$0xff] %vm326, %v324
    // Predicated region
    $region14: #{tpu_custom_call.1} parent=1 // pred_check
      _
    $region15: #{tpu_custom_call.1} parent=1 // pred_check_branch
      %329 = sbr.rel (0) target = $region17
    $region16: #{tpu_custom_call.1} parent=1 // pred_region
      %331 = vsyncadd [#allocation3], 0
      %s333 = sshll.u32 [#allocation2], 4
      %s334 = int_to_ptr.vmem [resolvable:$true] %s333
      %s335 = sshll.u32 %s3, 4
      %s336 = int_to_ptr.hbm [resolvable:$true] %s335
      %338 = dma.vmem_to_hbm [thread:$0]  %s334, 128, %s336, [#allocation3]
    $region17: #{tpu_custom_call.1} parent=1 // pred_fallthru
      _
    // Predicated region
    $region18: #{tpu_custom_call.1} parent=1 // pred_check
      _
    $region19: #{tpu_custom_call.1} parent=1 // pred_check_branch
      %340 = sbr.rel (0) target = $region21
    $region20: #{tpu_custom_call.1} parent=1 // pred_region
      %342 = dma.done [#allocation3], 128
    $region21: #{tpu_custom_call.1} parent=1 // pred_fallthru
      _
    %343 = vsyncpa [#allocation3], 1

// kernel: tpu_custom_call.1
$region0: #{tpu_custom_call.1}
  #allocation0 [shape = 'u32[]', space=smem, size = 0x4, offset = 0x4, fixed_abs, tag = 'smem constant byte address 0x4 - core index']
  #allocation1 [shape = 'u32[72,128]{1,0:T(1,128)}', space=vmem, size = 0x9000, scoped, tag = 'internal scratch']
  %s0 = inlined_call_operand.vmem [shape: f32[8,5,63], index: 0, kind: input, shape index: {}]
  %s1 = inlined_call_operand.vmem [shape: s8[8,5,63], index: 1, kind: input, shape index: {}]
  %s2 = inlined_call_operand.vmem [shape: s8[4,63], index: 2, kind: input, shape index: {}]
  %s3 = inlined_call_operand.hbm [shape: f32[8,8], index: 3, kind: output, shape index: {}]
  %s4 = sld [smem:[#allocation0]]
  $region22: #{tpu_custom_call.1} parent=0
    _
  %s6 = ssub.s32 1, %s4
  %s7 = scalar_select 0, %s6, %s4
  $region1: #{tpu_custom_call.1} parent=0
    #allocation2 [shape = 'u8[4096]{0}', space=vmem, size = 0x1000, scoped, tag = 'output window, operand 0, single buffered']
    #allocation3 [shape = 's32[1]{0}', space=sflag, size = 0x4, scoped, tag = 'scoped memory for tpu_custom_call.1']
    %8 = vsyncpa [#allocation3], 0
    // Predicated region
    $region2: #{tpu_custom_call.1} parent=1 // pred_check
      _
    $region3: #{tpu_custom_call.1} parent=1 // pred_check_branch
      %10 = sbr.rel (0) target = $region5
    $region4: #{tpu_custom_call.1} parent=1 // pred_region
      _
    $region5: #{tpu_custom_call.1} parent=1 // pred_fallthru
      _
    // Predicated region
    $region6: #{tpu_custom_call.1} parent=1 // pred_check
      _
    $region7: #{tpu_custom_call.1} parent=1 // pred_check_branch
      %12 = sbr.rel (0) target = $region9
    $region8: #{tpu_custom_call.1} parent=1 // pred_region
      _
    $region9: #{tpu_custom_call.1} parent=1 // pred_fallthru
      _
    // Predicated region
    $region10: #{tpu_custom_call.1} parent=1 // pred_check
      _
    $region11: #{tpu_custom_call.1} parent=1 // pred_check_branch
      %14 = sbr.rel (0) target = $region13
    $region12: #{tpu_custom_call.1} parent=1 // pred_region
      _
    $region13: #{tpu_custom_call.1} parent=1 // pred_fallthru
      _
    %v17 = vld [vmem:[%s2] sm:$0x1]
    %vm18 = vnez %v17
    %v19 = vld [vmem:[%s0] sm:$0x7]
    %v20 = vld [vmem:[%s0 + $0x8] sm:$0x7]
    %v21 = vld [vmem:[%s0 + $0x10] sm:$0x7]
    %v22 = vld [vmem:[%s0 + $0x18] sm:$0x7]
    %v23 = vld [vmem:[%s0 + $0x20] sm:$0x7]
    %v24 = vld [vmem:[%s0 + $0x28] sm:$0x7]
    %v25 = vld [vmem:[%s0 + $0x30] sm:$0x7]
    %v26 = vld [vmem:[%s0 + $0x38] sm:$0x7]
    %v27 = vld [vmem:[%s1] sm:$0x1]
    %v28 = vld [vmem:[%s1 + $0x2] sm:$0x1]
    %v29 = vld [vmem:[%s1 + $0x4] sm:$0x1]
    %v30 = vld [vmem:[%s1 + $0x6] sm:$0x1]
    %v31 = vld [vmem:[%s1 + $0x8] sm:$0x1]
    %v32 = vld [vmem:[%s1 + $0xa] sm:$0x1]
    %v33 = vld [vmem:[%s1 + $0xc] sm:$0x1]
    %v34 = vld [vmem:[%s1 + $0xe] sm:$0x1]
    %vm35 = vnez %v27
    %vm36 = vnez %v28
    %vm37 = vnez %v29
    %vm38 = vnez %v30
    %vm39 = vnez %v31
    %vm40 = vnez %v32
    %vm41 = vnez %v33
    %vm42 = vnez %v34
    %v43 = vsel %vm35, 16843009, 0
    %v44 = vsel %vm36, 16843009, 0
    %v45 = vsel %vm37, 16843009, 0
    %v46 = vsel %vm38, 16843009, 0
    %v47 = vsel %vm39, 16843009, 0
    %v48 = vsel %vm40, 16843009, 0
    %v49 = vsel %vm41, 16843009, 0
    %v50 = vsel %vm42, 16843009, 0
    %v51 = vunpack.c.0.s8 %v43
    %v52 = vunpack.c.0.s8 %v44
    %v53 = vunpack.c.0.s8 %v45
    %v54 = vunpack.c.0.s8 %v46
    %v55 = vunpack.c.0.s8 %v47
    %v56 = vunpack.c.0.s8 %v48
    %v57 = vunpack.c.0.s8 %v49
    %v58 = vunpack.c.0.s8 %v50
    %vm59 = vcmp.ne.s32.totalorder %v51, 0
    %vm60 = vcmp.ne.s32.totalorder %v52, 0
    %vm61 = vcmp.ne.s32.totalorder %v53, 0
    %vm62 = vcmp.ne.s32.totalorder %v54, 0
    %vm63 = vcmp.ne.s32.totalorder %v55, 0
    %vm64 = vcmp.ne.s32.totalorder %v56, 0
    %vm65 = vcmp.ne.s32.totalorder %v57, 0
    %vm66 = vcmp.ne.s32.totalorder %v58, 0
    %v67 = vsel %vm59, %v19, -10.0
    %v68 = vsel %vm60, %v20, -10.0
    %v69 = vsel %vm61, %v21, -10.0
    %v70 = vsel %vm62, %v22, -10.0
    %v71 = vsel %vm63, %v23, -10.0
    %v72 = vsel %vm64, %v24, -10.0
    %v73 = vsel %vm65, %v25, -10.0
    %v74 = vsel %vm66, %v26, -10.0
    %vm75 = vcmask 509952
    %v76 = vsel %vm75, %v67, -inf
    %v77 = vrot.slane %v76, 4
    %v78 = vmax.f32 %v76, %v77
    %v79 = vrot.slane %v78, 2
    %v80 = vmax.f32 %v78, %v79
    %v81 = vrot.slane %v80, 1
    %v82 = vmax.f32 %v80, %v81
    %v83 = vsel %vm75, %v68, -inf
    %v84 = vrot.slane %v83, 4
    %v85 = vmax.f32 %v83, %v84
    %v86 = vrot.slane %v85, 2
    %v87 = vmax.f32 %v85, %v86
    %v88 = vrot.slane %v87, 1
    %v89 = vmax.f32 %v87, %v88
    %v90 = vsel %vm75, %v69, -inf
    %v91 = vrot.slane %v90, 4
    %v92 = vmax.f32 %v90, %v91
    %v93 = vrot.slane %v92, 2
    %v94 = vmax.f32 %v92, %v93
    %v95 = vrot.slane %v94, 1
    %v96 = vmax.f32 %v94, %v95
    %v97 = vsel %vm75, %v70, -inf
    %v98 = vrot.slane %v97, 4
    %v99 = vmax.f32 %v97, %v98
    %v100 = vrot.slane %v99, 2
    %v101 = vmax.f32 %v99, %v100
    %v102 = vrot.slane %v101, 1
    %v103 = vmax.f32 %v101, %v102
    %v104 = vsel %vm75, %v71, -inf
    %v105 = vrot.slane %v104, 4
    %v106 = vmax.f32 %v104, %v105
    %v107 = vrot.slane %v106, 2
    %v108 = vmax.f32 %v106, %v107
    %v109 = vrot.slane %v108, 1
    %v110 = vmax.f32 %v108, %v109
    %v111 = vsel %vm75, %v72, -inf
    %v112 = vrot.slane %v111, 4
    %v113 = vmax.f32 %v111, %v112
    %v114 = vrot.slane %v113, 2
    %v115 = vmax.f32 %v113, %v114
    %v116 = vrot.slane %v115, 1
    %v117 = vmax.f32 %v115, %v116
    %v118 = vsel %vm75, %v73, -inf
    %v119 = vrot.slane %v118, 4
    %v120 = vmax.f32 %v118, %v119
    %v121 = vrot.slane %v120, 2
    %v122 = vmax.f32 %v120, %v121
    %v123 = vrot.slane %v122, 1
    %v124 = vmax.f32 %v122, %v123
    %v125 = vsel %vm75, %v74, -inf
    %v126 = vrot.slane %v125, 4
    %v127 = vmax.f32 %v125, %v126
    %v128 = vrot.slane %v127, 2
    %v129 = vmax.f32 %v127, %v128
    %v130 = vrot.slane %v129, 1
    %v131 = vmax.f32 %v129, %v130
    %v132 = vsel %vm18, 16843009, 0
    %v133 = vunpack.c.0.s8 %v132
    %vm134 = vcmp.ne.s32.totalorder %v133, 0
    %v135 = vsel %vm134, 1, 0
    %vm136 = vcmp.eq.s32.totalorder %v135, 1
    %v137 = vsel %vm136, %v82, -3.4028235e+38
    %v138 = vsel %vm136, %v89, -3.4028235e+38
    %v139 = vsel %vm136, %v96, -3.4028235e+38
    %v140 = vsel %vm136, %v103, -3.4028235e+38
    %v141 = vsel %vm136, %v110, -3.4028235e+38
    %v142 = vsel %vm136, %v117, -3.4028235e+38
    %v143 = vsel %vm136, %v124, -3.4028235e+38
    %v144 = vsel %vm136, %v131, -3.4028235e+38
    %vm145 = vcmask 510976
    %v146 = vsel %vm145, %v137, -inf
    %147 = vmax.xlane.f32.xlu0 %v146
    %v148 = vpop.xlane.xlu0 %147
    %v149 = vsel %vm145, %v138, -inf
    %150 = vmax.xlane.f32.xlu0 %v149
    %v151 = vpop.xlane.xlu0 %150
    %v152 = vsel %vm145, %v139, -inf
    %153 = vmax.xlane.f32.xlu0 %v152
    %v154 = vpop.xlane.xlu0 %153
    %v155 = vsel %vm145, %v140, -inf
    %156 = vmax.xlane.f32.xlu0 %v155
    %v157 = vpop.xlane.xlu0 %156
    %v158 = vsel %vm145, %v141, -inf
    %159 = vmax.xlane.f32.xlu0 %v158
    %v160 = vpop.xlane.xlu0 %159
    %v161 = vsel %vm145, %v142, -inf
    %162 = vmax.xlane.f32.xlu0 %v161
    %v163 = vpop.xlane.xlu0 %162
    %v164 = vsel %vm145, %v143, -inf
    %165 = vmax.xlane.f32.xlu0 %v164
    %v166 = vpop.xlane.xlu0 %165
    %v167 = vsel %vm145, %v144, -inf
    %168 = vmax.xlane.f32.xlu0 %v167
    %v169 = vpop.xlane.xlu0 %168
    %v178 = vlaneseq
    %v179 = vand.u32 %v178, 127
    %v180 = vperm.slane %v148, %v179
    %v181 = vperm.slane %v151, %v179
    %v182 = vperm.slane %v154, %v179
    %v183 = vperm.slane %v157, %v179
    %v184 = vperm.slane %v160, %v179
    %v185 = vperm.slane %v163, %v179
    %v186 = vperm.slane %v166, %v179
    %v187 = vperm.slane %v169, %v179
    %vm188 = vcmask 1041409
    %v189 = vsel %vm188, %v181, %v180
    %vm190 = vcmask 1042434
    %v191 = vsel %vm190, %v182, %v189
    %vm192 = vcmask 1043459
    %v193 = vsel %vm192, %v183, %v191
    %vm194 = vcmask 1044484
    %v195 = vsel %vm194, %v184, %v193
    %vm196 = vcmask 1045509
    %v197 = vsel %vm196, %v185, %v195
    %vm198 = vcmask 1046534
    %v199 = vsel %vm198, %v186, %v197
    %vm200 = vcmask 1047559
    %v201 = vsel %vm200, %v187, %v199
    %vm203 = vcmask 31744
    %204 = vst.msk [vmem:[#allocation2] sm:$0xff] %vm203, %v201
    %v205 = vld [vmem:[%s0 + $0x2] sm:$0x7]
    %v206 = vld [vmem:[%s0 + $0xa] sm:$0x7]
    %v207 = vld [vmem:[%s0 + $0x12] sm:$0x7]
    %v208 = vld [vmem:[%s0 + $0x1a] sm:$0x7]
    %v209 = vld [vmem:[%s0 + $0x22] sm:$0x7]
    %v210 = vld [vmem:[%s0 + $0x2a] sm:$0x7]
    %v211 = vld [vmem:[%s0 + $0x32] sm:$0x7]
    %v212 = vld [vmem:[%s0 + $0x3a] sm:$0x7]
    %v213 = vld [vmem:[%s1] sm:$0x3]
    %v214 = vld [vmem:[%s1 + $0x2] sm:$0x3]
    %v215 = vld [vmem:[%s1 + $0x4] sm:$0x3]
    %v216 = vld [vmem:[%s1 + $0x6] sm:$0x3]
    %v217 = vld [vmem:[%s1 + $0x8] sm:$0x3]
    %v218 = vld [vmem:[%s1 + $0xa] sm:$0x3]
    %v219 = vld [vmem:[%s1 + $0xc] sm:$0x3]
    %v220 = vld [vmem:[%s1 + $0xe] sm:$0x3]
    %vm221 = vnez %v213
    %vm222 = vnez %v214
    %vm223 = vnez %v215
    %vm224 = vnez %v216
    %vm225 = vnez %v217
    %vm226 = vnez %v218
    %vm227 = vnez %v219
    %vm228 = vnez %v220
    %v229 = vsel %vm221, 16843009, 0
    %v230 = vsel %vm222, 16843009, 0
    %v231 = vsel %vm223, 16843009, 0
    %v232 = vsel %vm224, 16843009, 0
    %v233 = vsel %vm225, 16843009, 0
    %v234 = vsel %vm226, 16843009, 0
    %v235 = vsel %vm227, 16843009, 0
    %v236 = vsel %vm228, 16843009, 0
    %v237 = vunpack.c.0.s8 %v229
    %v238 = vunpack.c.0.s8 %v230
    %v239 = vunpack.c.0.s8 %v231
    %v240 = vunpack.c.0.s8 %v232
    %v241 = vunpack.c.0.s8 %v233
    %v242 = vunpack.c.0.s8 %v234
    %v243 = vunpack.c.0.s8 %v235
    %v244 = vunpack.c.0.s8 %v236
    %vm245 = vcmp.ne.s32.totalorder %v237, 0
    %vm246 = vcmp.ne.s32.totalorder %v238, 0
    %vm247 = vcmp.ne.s32.totalorder %v239, 0
    %vm248 = vcmp.ne.s32.totalorder %v240, 0
    %vm249 = vcmp.ne.s32.totalorder %v241, 0
    %vm250 = vcmp.ne.s32.totalorder %v242, 0
    %vm251 = vcmp.ne.s32.totalorder %v243, 0
    %vm252 = vcmp.ne.s32.totalorder %v244, 0
    %v253 = vsel %vm245, 1, 0
    %v254 = vsel %vm246, 1, 0
    %v255 = vsel %vm247, 1, 0
    %v256 = vsel %vm248, 1, 0
    %v257 = vsel %vm249, 1, 0
    %v258 = vsel %vm250, 1, 0
    %v259 = vsel %vm251, 1, 0
    %v260 = vsel %vm252, 1, 0
    %v261 = vrot.slane %v253, 2
    %v262 = vrot.slane %v254, 2
    %v263 = vrot.slane %v255, 2
    %v264 = vrot.slane %v256, 2
    %v265 = vrot.slane %v257, 2
    %v266 = vrot.slane %v258, 2
    %v267 = vrot.slane %v259, 2
    %v268 = vrot.slane %v260, 2
    %vm269 = vcmp.ne.s32.totalorder %v261, 0
    %vm270 = vcmp.ne.s32.totalorder %v262, 0
    %vm271 = vcmp.ne.s32.totalorder %v263, 0
    %vm272 = vcmp.ne.s32.totalorder %v264, 0
    %vm273 = vcmp.ne.s32.totalorder %v265, 0
    %vm274 = vcmp.ne.s32.totalorder %v266, 0
    %vm275 = vcmp.ne.s32.totalorder %v267, 0
    %vm276 = vcmp.ne.s32.totalorder %v268, 0
    %v277 = vsel %vm269, %v205, -10.0
    %v278 = vsel %vm270, %v206, -10.0
    %v279 = vsel %vm271, %v207, -10.0
    %v280 = vsel %vm272, %v208, -10.0
    %v281 = vsel %vm273, %v209, -10.0
    %v282 = vsel %vm274, %v210, -10.0
    %v283 = vsel %vm275, %v211, -10.0
    %v284 = vsel %vm276, %v212, -10.0
    %v285 = vsel %vm75, %v277, -inf
    %v286 = vrot.slane %v285, 4
    %v287 = vmax.f32 %v285, %v286
    %v288 = vrot.slane %v287, 2
    %v289 = vmax.f32 %v287, %v288
    %v290 = vrot.slane %v289, 1
    %v291 = vmax.f32 %v289, %v290
    %v292 = vsel %vm75, %v278, -inf
    %v293 = vrot.slane %v292, 4
    %v294 = vmax.f32 %v292, %v293
    %v295 = vrot.slane %v294, 2
    %v296 = vmax.f32 %v294, %v295
    %v297 = vrot.slane %v296, 1
    %v298 = vmax.f32 %v296, %v297
    %v299 = vsel %vm75, %v279, -inf
    %v300 = vrot.slane %v299, 4
    %v301 = vmax.f32 %v299, %v300
    %v302 = vrot.slane %v301, 2
    %v303 = vmax.f32 %v301, %v302
    %v304 = vrot.slane %v303, 1
    %v305 = vmax.f32 %v303, %v304
    %v306 = vsel %vm75, %v280, -inf
    %v307 = vrot.slane %v306, 4
    %v308 = vmax.f32 %v306, %v307
    %v309 = vrot.slane %v308, 2
    %v310 = vmax.f32 %v308, %v309
    %v311 = vrot.slane %v310, 1
    %v312 = vmax.f32 %v310, %v311
    %v313 = vsel %vm75, %v281, -inf
    %v314 = vrot.slane %v313, 4
    %v315 = vmax.f32 %v313, %v314
    %v316 = vrot.slane %v315, 2
    %v317 = vmax.f32 %v315, %v316
    %v318 = vrot.slane %v317, 1
    %v319 = vmax.f32 %v317, %v318
    %v320 = vsel %vm75, %v282, -inf
    %v321 = vrot.slane %v320, 4
    %v322 = vmax.f32 %v320, %v321
    %v323 = vrot.slane %v322, 2
    %v324 = vmax.f32 %v322, %v323
    %v325 = vrot.slane %v324, 1
    %v326 = vmax.f32 %v324, %v325
    %v327 = vsel %vm75, %v283, -inf
    %v328 = vrot.slane %v327, 4
    %v329 = vmax.f32 %v327, %v328
    %v330 = vrot.slane %v329, 2
    %v331 = vmax.f32 %v329, %v330
    %v332 = vrot.slane %v331, 1
    %v333 = vmax.f32 %v331, %v332
    %v334 = vsel %vm75, %v284, -inf
    %v335 = vrot.slane %v334, 4
    %v336 = vmax.f32 %v334, %v335
    %v337 = vrot.slane %v336, 2
    %v338 = vmax.f32 %v336, %v337
    %v339 = vrot.slane %v338, 1
    %v340 = vmax.f32 %v338, %v339
    %v341 = vsel %vm136, %v291, -3.4028235e+38
    %v342 = vsel %vm136, %v298, -3.4028235e+38
    %v343 = vsel %vm136, %v305, -3.4028235e+38
    %v344 = vsel %vm136, %v312, -3.4028235e+38
    %v345 = vsel %vm136, %v319, -3.4028235e+38
    %v346 = vsel %vm136, %v326, -3.4028235e+38
    %v347 = vsel %vm136, %v333, -3.4028235e+38
    %v348 = vsel %vm136, %v340, -3.4028235e+38
    %v349 = vsel %vm145, %v341, -inf
    %350 = vmax.xlane.f32.xlu0 %v349
    %v351 = vpop.xlane.xlu0 %350
    %v352 = vsel %vm145, %v342, -inf
    %353 = vmax.xlane.f32.xlu0 %v352
    %v354 = vpop.xlane.xlu0 %353
    %v355 = vsel %vm145, %v343, -inf
    %356 = vmax.xlane.f32.xlu0 %v355
    %v357 = vpop.xlane.xlu0 %356
    %v358 = vsel %vm145, %v344, -inf
    %359 = vmax.xlane.f32.xlu0 %v358
    %v360 = vpop.xlane.xlu0 %359
    %v361 = vsel %vm145, %v345, -inf
    %362 = vmax.xlane.f32.xlu0 %v361
    %v363 = vpop.xlane.xlu0 %362
    %v364 = vsel %vm145, %v346, -inf
    %365 = vmax.xlane.f32.xlu0 %v364
    %v366 = vpop.xlane.xlu0 %365
    %v367 = vsel %vm145, %v347, -inf
    %368 = vmax.xlane.f32.xlu0 %v367
    %v369 = vpop.xlane.xlu0 %368
    %v370 = vsel %vm145, %v348, -inf
    %371 = vmax.xlane.f32.xlu0 %v370
    %v372 = vpop.xlane.xlu0 %371
    %v381 = vadd.s32 %v179, 4294967292
    %v382 = vperm.slane %v351, %v381
    %v383 = vperm.slane %v354, %v381
    %v384 = vperm.slane %v357, %v381
    %v385 = vperm.slane %v360, %v381
    %v386 = vperm.slane %v363, %v381
    %v387 = vperm.slane %v366, %v381
    %v388 = vperm.slane %v369, %v381
    %v389 = vperm.slane %v372, %v381
    %v390 = vsel %vm188, %v383, %v382
    %v391 = vsel %vm190, %v384, %v390
    %v392 = vsel %vm192, %v385, %v391
    %v393 = vsel %vm194, %v386, %v392
    %v394 = vsel %vm196, %v387, %v393
    %v395 = vsel %vm198, %v388, %v394
    %v396 = vsel %vm200, %v389, %v395
    %vm398 = vcmask 64544
    %399 = vst.msk [vmem:[#allocation2] sm:$0xff] %vm398, %v396
    // Predicated region
    $region14: #{tpu_custom_call.1} parent=1 // pred_check
      _
    $region15: #{tpu_custom_call.1} parent=1 // pred_check_branch
      %401 = sbr.rel (0) target = $region17
    $region16: #{tpu_custom_call.1} parent=1 // pred_region
      %403 = vsyncadd [#allocation3], 0
      %s405 = sshll.u32 [#allocation2], 4
      %s406 = int_to_ptr.vmem [resolvable:$true] %s405
      %s407 = sshll.u32 %s3, 4
      %s408 = int_to_ptr.hbm [resolvable:$true] %s407
      %410 = dma.vmem_to_hbm [thread:$0]  %s406, 128, %s408, [#allocation3]
    $region17: #{tpu_custom_call.1} parent=1 // pred_fallthru
      _
    // Predicated region
    $region18: #{tpu_custom_call.1} parent=1 // pred_check
      _
    $region19: #{tpu_custom_call.1} parent=1 // pred_check_branch
      %412 = sbr.rel (0) target = $region21
    $region20: #{tpu_custom_call.1} parent=1 // pred_region
      %414 = dma.done [#allocation3], 128
    $region21: #{tpu_custom_call.1} parent=1 // pred_fallthru
      _
    %415 = vsyncpa [#allocation3], 1

</llo_original>
